<compile_context>
chip_gen: v6e
topology: v6e:2x2x1
jax: 0.10.0
libtpu: 0.0.40
codegen_flags: <defaults>
</compile_context>

<pallas_src>
import jax
import jax.numpy as jnp
from jax.experimental import pallas as pl
from jax.experimental.pallas import tpu as pltpu


def regularizer_kernel(xt_ref, w1_ref, b1_ref, w2_ref, b2_ref, w3t_ref, b3_ref, o_ref):
    # Layer 1: (h1, in) @ (in, tb) -> (h1, tb). bf16 MXU, f32 accumulation,
    # f32 bias-column broadcast + EUP sigmoid.
    h1 = jnp.dot(w1_ref[...], xt_ref[...],
                 preferred_element_type=jnp.float32) + b1_ref[...]
    h1 = jax.nn.sigmoid(h1)

    # Layer 2: cast activations to the weight dtype (bf16) only at the MXU;
    # accumulate and apply sigmoid in f32.
    h2 = jnp.dot(w2_ref[...], h1.astype(w2_ref.dtype),
                 preferred_element_type=jnp.float32) + b2_ref[...]
    h2 = jax.nn.sigmoid(h2)

    # Layer 3 (out_features == 1): exact-f32 broadcast multiply by the W3
    # column and a sublane reduction -> lane-dense (1, tb) row, full-lane
    # (unmasked) output store, no 1-lane MXU pass.
    y = jnp.sum(w3t_ref[...] * h2, axis=0, keepdims=True) + b3_ref[...]
    o_ref[...] = y.astype(o_ref.dtype)


def _choose_tiling(batch, tb_max):
    """Pick (padded_batch, batch_tile). Tile is a multiple of 128 (lane-dense out)."""
    tb_max = max(128, (tb_max // 128) * 128)
    b_pad = ((batch + 127) // 128) * 128
    tb = min(tb_max, b_pad)
    b_pad = ((b_pad + tb - 1) // tb) * tb
    # Prefer >=2 grid steps so v7x can shard the "parallel" batch axis across
    # both TensorCores -- but only when the halved tile stays a multiple of 128.
    if b_pad // tb < 2 and tb % 256 == 0:
        tb //= 2
    return b_pad, tb


def regularizer_forward(x, params, *, tb=512, mxu_dtype=jnp.bfloat16):
    """x: [B, input_dim] float32. params in PyTorch layout. Returns [B, 1] float32."""
    w1, b1, w2, b2, w3, b3 = params
    batch, in_dim = x.shape
    h1_dim = w1.shape[0]
    h2_dim = w2.shape[0]

    b_pad, tb = _choose_tiling(batch, tb)
    if b_pad != batch:
        x = jnp.pad(x, ((0, b_pad - batch), (0, 0)))
    num_tiles = b_pad // tb

    # Transposed, bf16 activations: [in_dim, b_pad]. One XLA transpose + cast
    # in the wrapper keeps every in-kernel operand lane-dense along the batch.
    xt = jnp.transpose(x).astype(mxu_dtype)
    w1_c = w1.astype(mxu_dtype)                       # (h1, in)  PyTorch layout
    w2_c = w2.astype(mxu_dtype)                       # (h2, h1)  PyTorch layout
    b1_col = b1.reshape(h1_dim, 1).astype(jnp.float32)
    b2_col = b2.reshape(h2_dim, 1).astype(jnp.float32)
    w3_col = jnp.transpose(w3).astype(jnp.float32)    # (h2, 1)
    b3_2d = b3.reshape(1, 1).astype(jnp.float32)

    resident = lambda i: (0, 0)  # weights/biases resident across all batch tiles

    # VMEM footprint is tiny for these shapes (tb<=512, dims<=128), so the
    # default scoped VMEM limit is ample on v5e/v6e/v7x.
    out_row = pl.pallas_call(
        regularizer_kernel,
        out_shape=jax.ShapeDtypeStruct((1, b_pad), jnp.float32),
        grid_spec=pltpu.PrefetchScalarGridSpec(
            num_scalar_prefetch=0,
            grid=(num_tiles,),
            in_specs=[
                pl.BlockSpec((in_dim, tb), lambda i: (0, i)),   # x^T tile (streamed)
                pl.BlockSpec((h1_dim, in_dim), resident),       # W1
                pl.BlockSpec((h1_dim, 1), resident),            # b1 column
                pl.BlockSpec((h2_dim, h1_dim), resident),       # W2
                pl.BlockSpec((h2_dim, 1), resident),            # b2 column
                pl.BlockSpec((h2_dim, 1), resident),            # W3^T column
                pl.BlockSpec((1, 1), resident),                 # b3
            ],
            out_specs=pl.BlockSpec((1, tb), lambda i: (0, i)),  # lane-dense row
        ),
        compiler_params=pltpu.CompilerParams(
            dimension_semantics=("parallel",),
        ),
    )(xt, w1_c, b1_col, w2_c, b2_col, w3_col, b3_2d)

    # Row j of the lane-dense output is the prediction for batch row j.
    return out_row.reshape(b_pad, 1)[:batch]


def init_params(key, input_dim, hidden_dim1, hidden_dim2):
    # Mirrors the PyTorch __init__: weights ~ Normal(0, 0.001), biases = 0,
    # weights in PyTorch nn.Linear layout [out_features, in_features].
    k1, k2, k3 = jax.random.split(key, 3)
    w1 = 0.001 * jax.random.normal(k1, (hidden_dim1, input_dim), jnp.float32)
    b1 = jnp.zeros((hidden_dim1,), jnp.float32)
    w2 = 0.001 * jax.random.normal(k2, (hidden_dim2, hidden_dim1), jnp.float32)
    b2 = jnp.zeros((hidden_dim2,), jnp.float32)
    w3 = 0.001 * jax.random.normal(k3, (1, hidden_dim2), jnp.float32)
    b3 = jnp.zeros((1,), jnp.float32)
    return (w1, b1, w2, b2, w3, b3)


def reference_forward(x, params, *, mxu_dtype=jnp.bfloat16):
    # Pure-JAX reference with the same bf16 rounding of the MXU operands.
    w1, b1, w2, b2, w3, b3 = params
    f32 = jnp.float32
    hp = jax.lax.Precision.HIGHEST
    x_c = x.astype(mxu_dtype).astype(f32)
    w1_c = w1.astype(mxu_dtype).astype(f32)
    w2_c = w2.astype(mxu_dtype).astype(f32)
    h1 = jax.nn.sigmoid(jnp.dot(x_c, w1_c.T, precision=hp) + b1[None, :])
    h2 = jax.nn.sigmoid(
        jnp.dot(h1.astype(mxu_dtype).astype(f32), w2_c.T, precision=hp) + b2[None, :])
    return jnp.dot(h2, w3.T, precision=hp) + b3[None, :]


if __name__ == "__main__":
    key = jax.random.PRNGKey(0)
    kx, kp = jax.random.split(key)

    batch, input_dim, hidden_dim1, hidden_dim2 = 16, 32, 64, 32
    x = jax.random.normal(kx, (batch, input_dim), jnp.float32)
    params = init_params(kp, input_dim, hidden_dim1, hidden_dim2)

    out = regularizer_forward(x, params)
    out = jax.block_until_ready(out)

    ref = reference_forward(x, params)
    assert out.shape == (batch, 1)
    assert jnp.allclose(out, ref, atol=2e-5, rtol=1e-3), (
        f"max abs err {jnp.max(jnp.abs(out - ref))}")

    print("KERNEL_OK")
</pallas_src>

<mosaic_0001>
module attributes {stable_mosaic.version = 11 : i64} {
  func.func @regularizer_kernel(%arg0: i32, %arg1: memref<32x128xbf16, #tpu.memory_space<vmem>>, %arg2: memref<64x32xbf16, #tpu.memory_space<vmem>>, %arg3: memref<64x1xf32, #tpu.memory_space<vmem>>, %arg4: memref<32x64xbf16, #tpu.memory_space<vmem>>, %arg5: memref<32x1xf32, #tpu.memory_space<vmem>>, %arg6: memref<32x1xf32, #tpu.memory_space<vmem>>, %arg7: memref<1x1xf32, #tpu.memory_space<vmem>>, %arg8: memref<1x128xf32, #tpu.memory_space<vmem>>) attributes {dimension_semantics = [#tpu.dimension_semantics<parallel>], iteration_bounds = array<i64: 1>, scalar_prefetch = 0 : i64, scratch_operands = 0 : i64, tpu.core_type = #tpu.core_type<tc>, window_params = [{transform_indices = @transform_0, window_bounds = array<i64: 32, 128>}, {pipeline_mode = #tpu.pipeline_mode<synchronous>, transform_indices = @transform_1, window_bounds = array<i64: 64, 32>}, {pipeline_mode = #tpu.pipeline_mode<synchronous>, transform_indices = @transform_2, window_bounds = array<i64: 64, 1>}, {pipeline_mode = #tpu.pipeline_mode<synchronous>, transform_indices = @transform_3, window_bounds = array<i64: 32, 64>}, {pipeline_mode = #tpu.pipeline_mode<synchronous>, transform_indices = @transform_4, window_bounds = array<i64: 32, 1>}, {pipeline_mode = #tpu.pipeline_mode<synchronous>, transform_indices = @transform_5, window_bounds = array<i64: 32, 1>}, {pipeline_mode = #tpu.pipeline_mode<synchronous>, transform_indices = @transform_6, window_bounds = array<i64: 1, 1>}, {transform_indices = @transform_7, window_bounds = array<i64: 1, 128>}]} {
    %c0 = arith.constant 0 : index
    %c0_0 = arith.constant 0 : index
    %0 = vector.load %arg2[%c0, %c0_0] : memref<64x32xbf16, #tpu.memory_space<vmem>>, vector<64x32xbf16>
    %c0_1 = arith.constant 0 : index
    %c0_2 = arith.constant 0 : index
    %1 = vector.load %arg1[%c0_1, %c0_2] : memref<32x128xbf16, #tpu.memory_space<vmem>>, vector<32x128xbf16>
    %cst = arith.constant dense<0.000000e+00> : vector<64x128xf32>
    %2 = tpu.matmul %0, %1, %cst {dimension_numbers = #tpu.dot_dimension_numbers<[1], [0], [0], [1], [0, 0, 1, 1], [], []>} : vector<64x32xbf16>, vector<32x128xbf16>, vector<64x128xf32> -> vector<64x128xf32>
    %c0_3 = arith.constant 0 : index
    %c0_4 = arith.constant 0 : index
    %3 = vector.load %arg3[%c0_3, %c0_4] : memref<64x1xf32, #tpu.memory_space<vmem>>, vector<64x1xf32>
    %4 = vector.broadcast %3 : vector<64x1xf32> to vector<64x128xf32>
    %5 = arith.addf %2, %4 : vector<64x128xf32>
    %6 = arith.negf %5 : vector<64x128xf32>
    %7 = math.exp %6 : vector<64x128xf32>
    %cst_5 = arith.constant 1.000000e+00 : f32
    %8 = vector.broadcast %cst_5 : f32 to vector<64x128xf32>
    %9 = arith.addf %8, %7 : vector<64x128xf32>
    %10 = arith.divf %8, %9 : vector<64x128xf32>
    %c0_6 = arith.constant 0 : index
    %c0_7 = arith.constant 0 : index
    %11 = vector.load %arg4[%c0_6, %c0_7] : memref<32x64xbf16, #tpu.memory_space<vmem>>, vector<32x64xbf16>
    %12 = arith.truncf %10 : vector<64x128xf32> to vector<64x128xbf16>
    %cst_8 = arith.constant dense<0.000000e+00> : vector<32x128xf32>
    %13 = tpu.matmul %11, %12, %cst_8 {dimension_numbers = #tpu.dot_dimension_numbers<[1], [0], [0], [1], [0, 0, 1, 1], [], []>} : vector<32x64xbf16>, vector<64x128xbf16>, vector<32x128xf32> -> vector<32x128xf32>
    %c0_9 = arith.constant 0 : index
    %c0_10 = arith.constant 0 : index
    %14 = vector.load %arg5[%c0_9, %c0_10] : memref<32x1xf32, #tpu.memory_space<vmem>>, vector<32x1xf32>
    %15 = vector.broadcast %14 : vector<32x1xf32> to vector<32x128xf32>
    %16 = arith.addf %13, %15 : vector<32x128xf32>
    %17 = arith.negf %16 : vector<32x128xf32>
    %18 = math.exp %17 : vector<32x128xf32>
    %cst_11 = arith.constant 1.000000e+00 : f32
    %19 = vector.broadcast %cst_11 : f32 to vector<32x128xf32>
    %20 = arith.addf %19, %18 : vector<32x128xf32>
    %21 = arith.divf %19, %20 : vector<32x128xf32>
    %c0_12 = arith.constant 0 : index
    %c0_13 = arith.constant 0 : index
    %22 = vector.load %arg6[%c0_12, %c0_13] : memref<32x1xf32, #tpu.memory_space<vmem>>, vector<32x1xf32>
    %23 = vector.broadcast %22 : vector<32x1xf32> to vector<32x128xf32>
    %24 = arith.mulf %23, %21 : vector<32x128xf32>
    %cst_14 = arith.constant dense<0.000000e+00> : vector<128xf32>
    %25 = vector.multi_reduction <add>, %24, %cst_14 [0] : vector<32x128xf32> to vector<128xf32>
    %26 = vector.shape_cast %25 : vector<128xf32> to vector<1x128xf32>
    %c0_15 = arith.constant 0 : index
    %c0_16 = arith.constant 0 : index
    %27 = vector.load %arg7[%c0_15, %c0_16] : memref<1x1xf32, #tpu.memory_space<vmem>>, vector<1x1xf32>
    %28 = vector.broadcast %27 : vector<1x1xf32> to vector<1x128xf32>
    %29 = arith.addf %26, %28 : vector<1x128xf32>
    %c0_17 = arith.constant 0 : index
    %c0_18 = arith.constant 0 : index
    %30 = vector.load %arg8[%c0_17, %c0_18] : memref<1x128xf32, #tpu.memory_space<vmem>>, vector<1x128xf32>
    tpu.vector_store %arg8[%c0_17, %c0_18], %29 {strides = array<i32>} : memref<1x128xf32, #tpu.memory_space<vmem>>, vector<1x128xf32>,
    return
  }
  func.func @transform_0(%arg0: i32) -> (i32, i32) {
    %c0_i32 = arith.constant 0 : i32
    %c0_i32_0 = arith.constant 0 : i32
    return %c0_i32, %arg0 : i32, i32
  }
  func.func @transform_1(%arg0: i32) -> (i32, i32) {
    %c0_i32 = arith.constant 0 : i32
    %c0_i32_0 = arith.constant 0 : i32
    %c0_i32_1 = arith.constant 0 : i32
    return %c0_i32, %c0_i32_0 : i32, i32
  }
  func.func @transform_2(%arg0: i32) -> (i32, i32) {
    %c0_i32 = arith.constant 0 : i32
    %c0_i32_0 = arith.constant 0 : i32
    %c0_i32_1 = arith.constant 0 : i32
    return %c0_i32, %c0_i32_0 : i32, i32
  }
  func.func @transform_3(%arg0: i32) -> (i32, i32) {
    %c0_i32 = arith.constant 0 : i32
    %c0_i32_0 = arith.constant 0 : i32
    %c0_i32_1 = arith.constant 0 : i32
    return %c0_i32, %c0_i32_0 : i32, i32
  }
  func.func @transform_4(%arg0: i32) -> (i32, i32) {
    %c0_i32 = arith.constant 0 : i32
    %c0_i32_0 = arith.constant 0 : i32
    %c0_i32_1 = arith.constant 0 : i32
    return %c0_i32, %c0_i32_0 : i32, i32
  }
  func.func @transform_5(%arg0: i32) -> (i32, i32) {
    %c0_i32 = arith.constant 0 : i32
    %c0_i32_0 = arith.constant 0 : i32
    %c0_i32_1 = arith.constant 0 : i32
    return %c0_i32, %c0_i32_0 : i32, i32
  }
  func.func @transform_6(%arg0: i32) -> (i32, i32) {
    %c0_i32 = arith.constant 0 : i32
    %c0_i32_0 = arith.constant 0 : i32
    %c0_i32_1 = arith.constant 0 : i32
    return %c0_i32, %c0_i32_0 : i32, i32
  }
  func.func @transform_7(%arg0: i32) -> (i32, i32) {
    %c0_i32 = arith.constant 0 : i32
    %c0_i32_0 = arith.constant 0 : i32
    return %c0_i32, %arg0 : i32, i32
  }
}

</mosaic_0001>

<llo_original>
// kernel: tpu_custom_call.1
$region0: #{tpu_custom_call.1}
  #allocation0 [shape = 'u32[]', space=smem, size = 0x4, offset = 0x4, fixed_abs, tag = 'smem constant byte address 0x4 - core index']
  #allocation1 [shape = 'u32[144,128]{1,0:T(1,128)}', space=vmem, size = 0x12000, scoped, tag = 'internal scratch']
  #allocation2 [shape = 'f32[1,1]{1,0:T(1,128)S(1)}', space=vmem, size = 0x200, scoped, tag = 'scoped memory for tpu_custom_call.1']
  %s0 = inlined_call_operand.vmem [shape: bf16[32,128], index: 0, kind: input, shape index: {}]
  %s1 = inlined_call_operand.vmem [shape: bf16[64,32], index: 1, kind: input, shape index: {}]
  %s2 = inlined_call_operand.vmem [shape: f32[64,1], index: 2, kind: input, shape index: {}]
  %s3 = inlined_call_operand.vmem [shape: bf16[32,64], index: 3, kind: input, shape index: {}]
  %s4 = inlined_call_operand.vmem [shape: f32[32,1], index: 4, kind: input, shape index: {}]
  %s5 = inlined_call_operand.vmem [shape: f32[32,1], index: 5, kind: input, shape index: {}]
  %s6 = inlined_call_operand.<no memory space> [shape: f32[1,1], index: 6, kind: input, shape index: {}]
  %s7 = inlined_call_operand.hbm [shape: f32[1,128], index: 7, kind: output, shape index: {}]
  %s8 = sld [smem:[#allocation0]]
  $region38: #{tpu_custom_call.1} parent=0
    _
  %s10 = ssub.s32 1, %s8
  %s11 = scalar_select 0, %s10, %s8
  %v12 = vstv %s6
  %13 = vst [vmem:[#allocation2] sm:$0x1] %v12
  $region1: #{tpu_custom_call.1} parent=0
    #allocation3 [shape = 'u8[512]{0}', space=vmem, size = 0x400, scoped, tag = 'output window, operand 0, single buffered']
    #allocation4 [shape = 's32[1]{0}', space=sflag, size = 0x4, scoped, tag = 'scoped memory for tpu_custom_call.1']
    %14 = vsyncpa [#allocation4], 0
    // Predicated region
    $region2: #{tpu_custom_call.1} parent=1 // pred_check
      _
    $region3: #{tpu_custom_call.1} parent=1 // pred_check_branch
      %16 = sbr.rel (0) target = $region5
    $region4: #{tpu_custom_call.1} parent=1 // pred_region
      _
    $region5: #{tpu_custom_call.1} parent=1 // pred_fallthru
      _
    // Predicated region
    $region6: #{tpu_custom_call.1} parent=1 // pred_check
      _
    $region7: #{tpu_custom_call.1} parent=1 // pred_check_branch
      %18 = sbr.rel (0) target = $region9
    $region8: #{tpu_custom_call.1} parent=1 // pred_region
      _
    $region9: #{tpu_custom_call.1} parent=1 // pred_fallthru
      _
    // Predicated region
    $region10: #{tpu_custom_call.1} parent=1 // pred_check
      _
    $region11: #{tpu_custom_call.1} parent=1 // pred_check_branch
      %20 = sbr.rel (0) target = $region13
    $region12: #{tpu_custom_call.1} parent=1 // pred_region
      _
    $region13: #{tpu_custom_call.1} parent=1 // pred_fallthru
      _
    // Predicated region
    $region14: #{tpu_custom_call.1} parent=1 // pred_check
      _
    $region15: #{tpu_custom_call.1} parent=1 // pred_check_branch
      %22 = sbr.rel (0) target = $region17
    $region16: #{tpu_custom_call.1} parent=1 // pred_region
      _
    $region17: #{tpu_custom_call.1} parent=1 // pred_fallthru
      _
    // Predicated region
    $region18: #{tpu_custom_call.1} parent=1 // pred_check
      _
    $region19: #{tpu_custom_call.1} parent=1 // pred_check_branch
      %24 = sbr.rel (0) target = $region21
    $region20: #{tpu_custom_call.1} parent=1 // pred_region
      _
    $region21: #{tpu_custom_call.1} parent=1 // pred_fallthru
      _
    // Predicated region
    $region22: #{tpu_custom_call.1} parent=1 // pred_check
      _
    $region23: #{tpu_custom_call.1} parent=1 // pred_check_branch
      %26 = sbr.rel (0) target = $region25
    $region24: #{tpu_custom_call.1} parent=1 // pred_region
      _
    $region25: #{tpu_custom_call.1} parent=1 // pred_fallthru
      _
    // Predicated region
    $region26: #{tpu_custom_call.1} parent=1 // pred_check
      _
    $region27: #{tpu_custom_call.1} parent=1 // pred_check_branch
      %28 = sbr.rel (0) target = $region29
    $region28: #{tpu_custom_call.1} parent=1 // pred_region
      _
    $region29: #{tpu_custom_call.1} parent=1 // pred_fallthru
      _
    %v30 = vld [vmem:[%s1] sm:$0xf]
    %v31 = vld [vmem:[%s1 + $0x4] sm:$0xf]
    %v32 = vld [vmem:[%s1 + $0x8] sm:$0xf]
    %v33 = vld [vmem:[%s1 + $0xc] sm:$0xf]
    %v34 = vld [vmem:[%s1 + $0x10] sm:$0xf]
    %v35 = vld [vmem:[%s1 + $0x14] sm:$0xf]
    %v36 = vld [vmem:[%s1 + $0x18] sm:$0xf]
    %v37 = vld [vmem:[%s1 + $0x1c] sm:$0xf]
    %v38 = vld [vmem:[%s0] sm:$0xf]
    %v39 = vld [vmem:[%s0 + $0x4] sm:$0xf]
    %v40 = vld [vmem:[%s0 + $0x8] sm:$0xf]
    %v41 = vld [vmem:[%s0 + $0xc] sm:$0xf]
    %v42 = vld [vmem:[%s2] sm:$0xff]
    %v43 = vld [vmem:[%s2 + $0x8] sm:$0xff]
    %v44 = vld [vmem:[%s2 + $0x10] sm:$0xff]
    %v45 = vld [vmem:[%s2 + $0x18] sm:$0xff]
    %v46 = vld [vmem:[%s2 + $0x20] sm:$0xff]
    %v47 = vld [vmem:[%s2 + $0x28] sm:$0xff]
    %v48 = vld [vmem:[%s2 + $0x30] sm:$0xff]
    %v49 = vld [vmem:[%s2 + $0x38] sm:$0xff]
    %51 = vset.pattern.permute.xlu0 0
    %52 = vperm.xlu0 %51, %v42
    %v53 = vpop.permute.xlu0 %52
    %56 = vset.pattern.permute.xlu0 0
    %57 = vperm.xlu0 %56, %v43
    %v58 = vpop.permute.xlu0 %57
    %61 = vset.pattern.permute.xlu0 0
    %62 = vperm.xlu0 %61, %v44
    %v63 = vpop.permute.xlu0 %62
    %66 = vset.pattern.permute.xlu0 0
    %67 = vperm.xlu0 %66, %v45
    %v68 = vpop.permute.xlu0 %67
    %71 = vset.pattern.permute.xlu0 0
    %72 = vperm.xlu0 %71, %v46
    %v73 = vpop.permute.xlu0 %72
    %76 = vset.pattern.permute.xlu0 0
    %77 = vperm.xlu0 %76, %v47
    %v78 = vpop.permute.xlu0 %77
    %81 = vset.pattern.permute.xlu0 0
    %82 = vperm.xlu0 %81, %v48
    %v83 = vpop.permute.xlu0 %82
    %86 = vset.pattern.permute.xlu0 0
    %87 = vperm.xlu0 %86, %v49
    %v88 = vpop.permute.xlu0 %87
    %v98 = vunpack.c.l.b16 %v30
    %v99 = vunpack.c.l.b16 %v31
    %v100 = vunpack.c.l.b16 %v32
    %v101 = vunpack.c.l.b16 %v33
    %v102 = vunpack.c.l.b16 %v34
    %v103 = vunpack.c.l.b16 %v35
    %v104 = vunpack.c.l.b16 %v36
    %v105 = vunpack.c.l.b16 %v37
    %v106 = vpack.c.b16 %v99, %v98
    %v107 = vpack.c.b16 %v101, %v100
    %v108 = vpack.c.b16 %v103, %v102
    %v109 = vpack.c.b16 %v105, %v104
    %v114 = vunpack.c.l.b16 %v38
    %v115 = vunpack.c.l.b16 %v39
    %v116 = vunpack.c.l.b16 %v40
    %v117 = vunpack.c.l.b16 %v41
    %v118 = vpack.c.b16 %v115, %v114
    %v119 = vpack.c.b16 %v117, %v116
    %vm122 = vcmask 261120
    %v124 = vsel %vm122, %v106, 0
    %v127 = vsel %vm122, %v107, 0
    %v130 = vsel %vm122, %v108, 0
    %v133 = vsel %vm122, %v109, 0
    %135 = vmatprep.subr.bf16.mxu0 0
    %136 = vmatpush1.bf16.msra.mxu0 0
    %137 = vmatprep.subr.bf16.mxu0 0
    %138 = vmatpush1.bf16.msra.mxu0 0
    %139 = vmatprep.subr.bf16.mxu0 0
    %140 = vmatpush1.bf16.msra.mxu0 0
    %141 = vmatprep.subr.bf16.mxu0 0
    %142 = vmatpush1.bf16.msra.mxu0 0
    %143 = vmatprep.subr.bf16.mxu0 0
    %144 = vmatpush1.bf16.msra.mxu0 0
    %145 = vmatprep.subr.bf16.mxu0 0
    %146 = vmatpush1.bf16.msra.mxu0 0
    %147 = vmatprep.subr.bf16.mxu0 0
    %148 = vmatpush1.bf16.msra.mxu0 %v119
    %149 = vmatprep.subr.bf16.mxu0 0
    %150 = vmatpush1.bf16.msra.mxu0 %v118
    %151 = vmatprep.subr.bf16.mxu0 0
    %152 = vmatpush2.bf16.msra.mxu0 0
    %153 = vmatprep.subr.bf16.mxu0 0
    %154 = vmatpush2.bf16.msra.mxu0 0
    %155 = vmatprep.subr.bf16.mxu0 0
    %156 = vmatpush2.bf16.msra.mxu0 0
    %157 = vmatprep.subr.bf16.mxu0 0
    %158 = vmatpush2.bf16.msra.mxu0 0
    %159 = vmatprep.subr.bf16.mxu0 0
    %160 = vmatpush2.bf16.msra.mxu0 0
    %161 = vmatprep.subr.bf16.mxu0 0
    %162 = vmatpush2.bf16.msra.mxu0 0
    %163 = vmatprep.subr.bf16.mxu0 0
    %164 = vmatpush2.bf16.msra.mxu0 0
    %165 = vmatprep.subr.bf16.mxu0 0
    %166 = vmatpush2.bf16.msra.mxu0 0
    %167 = vmatprep.mubr.bf16.mxu0 0
    %168 = vmatmul.mubr.bf16.gmra.mxu0 %v124
    %v169 = vpop.f32.mrf.mxu0
    %v170 = vadd.f32 %v53, %v169
    %v171 = vpop.f32.mrf.mxu0
    %v172 = vpop.f32.mrf.mxu0
    %v173 = vadd.f32 %v58, %v172
    %v174 = vpop.f32.mrf.mxu0
    %175 = vmatprep.mubr.bf16.mxu0 0
    %176 = vmatmul.mubr.bf16.gmra.mxu0 %v127
    %v177 = vpop.f32.mrf.mxu0
    %v178 = vadd.f32 %v63, %v177
    %v179 = vpop.f32.mrf.mxu0
    %v180 = vpop.f32.mrf.mxu0
    %v181 = vadd.f32 %v68, %v180
    %v182 = vpop.f32.mrf.mxu0
    %183 = vmatprep.mubr.bf16.mxu0 0
    %184 = vmatmul.mubr.bf16.gmra.mxu0 %v130
    %v185 = vpop.f32.mrf.mxu0
    %v186 = vadd.f32 %v73, %v185
    %v187 = vpop.f32.mrf.mxu0
    %v188 = vpop.f32.mrf.mxu0
    %v189 = vadd.f32 %v78, %v188
    %v190 = vpop.f32.mrf.mxu0
    %191 = vmatprep.mubr.bf16.mxu0 0
    %192 = vmatmul.mubr.bf16.gmra.mxu0 %v133
    %v193 = vpop.f32.mrf.mxu0
    %v194 = vadd.f32 %v83, %v193
    %v195 = vpop.f32.mrf.mxu0
    %v196 = vpop.f32.mrf.mxu0
    %v197 = vadd.f32 %v88, %v196
    %v198 = vpop.f32.mrf.mxu0
    %199 = vdwg.mxu0
    %v200 = vxor.u32 %v170, 2147483648
    %v201 = vxor.u32 %v173, 2147483648
    %v202 = vxor.u32 %v178, 2147483648
    %v203 = vxor.u32 %v181, 2147483648
    %v204 = vxor.u32 %v186, 2147483648
    %v205 = vxor.u32 %v189, 2147483648
    %v206 = vxor.u32 %v194, 2147483648
    %v207 = vxor.u32 %v197, 2147483648
    %v208 = vmul.f32 %v200, 1.442695
    %v209 = vpow.pop %v208
    %v210 = vmul.f32 %v201, 1.442695
    %v211 = vpow.pop %v210
    %v212 = vmul.f32 %v202, 1.442695
    %v213 = vpow.pop %v212
    %v214 = vmul.f32 %v203, 1.442695
    %v215 = vpow.pop %v214
    %v216 = vmul.f32 %v204, 1.442695
    %v217 = vpow.pop %v216
    %v218 = vmul.f32 %v205, 1.442695
    %v219 = vpow.pop %v218
    %v220 = vmul.f32 %v206, 1.442695
    %v221 = vpow.pop %v220
    %v222 = vmul.f32 %v207, 1.442695
    %v223 = vpow.pop %v222
    %v224 = vadd.f32 %v209, 1.0
    %v225 = vadd.f32 %v211, 1.0
    %v226 = vadd.f32 %v213, 1.0
    %v227 = vadd.f32 %v215, 1.0
    %v228 = vadd.f32 %v217, 1.0
    %v229 = vadd.f32 %v219, 1.0
    %v230 = vadd.f32 %v221, 1.0
    %v231 = vadd.f32 %v223, 1.0
    %v232 = vrcp.pop %v224
    %v233 = vmul.f32 1.0, %v232
    %v234 = vrcp.pop %v225
    %v235 = vmul.f32 1.0, %v234
    %v236 = vrcp.pop %v226
    %v237 = vmul.f32 1.0, %v236
    %v238 = vrcp.pop %v227
    %v239 = vmul.f32 1.0, %v238
    %v240 = vrcp.pop %v228
    %v241 = vmul.f32 1.0, %v240
    %v242 = vrcp.pop %v229
    %v243 = vmul.f32 1.0, %v242
    %v244 = vrcp.pop %v230
    %v245 = vmul.f32 1.0, %v244
    %v246 = vrcp.pop %v231
    %v247 = vmul.f32 1.0, %v246
    %v248 = vld [vmem:[%s3] sm:$0xf]
    %v249 = vld [vmem:[%s3 + $0x4] sm:$0xf]
    %v250 = vld [vmem:[%s3 + $0x8] sm:$0xf]
    %v251 = vld [vmem:[%s3 + $0xc] sm:$0xf]
    %v252 = vpack.c.bf16 %v235, %v233
    %v253 = vpack.c.bf16 %v239, %v237
    %v254 = vpack.c.bf16 %v243, %v241
    %v255 = vpack.c.bf16 %v247, %v245
    %v256 = vld [vmem:[%s4] sm:$0xff]
    %v257 = vld [vmem:[%s4 + $0x8] sm:$0xff]
    %v258 = vld [vmem:[%s4 + $0x10] sm:$0xff]
    %v259 = vld [vmem:[%s4 + $0x18] sm:$0xff]
    %261 = vset.pattern.permute.xlu0 0
    %262 = vperm.xlu0 %261, %v256
    %v263 = vpop.permute.xlu0 %262
    %266 = vset.pattern.permute.xlu0 0
    %267 = vperm.xlu0 %266, %v257
    %v268 = vpop.permute.xlu0 %267
    %271 = vset.pattern.permute.xlu0 0
    %272 = vperm.xlu0 %271, %v258
    %v273 = vpop.permute.xlu0 %272
    %276 = vset.pattern.permute.xlu0 0
    %277 = vperm.xlu0 %276, %v259
    %v278 = vpop.permute.xlu0 %277
    %v284 = vunpack.c.l.b16 %v248
    %v285 = vunpack.c.l.b16 %v249
    %v286 = vunpack.c.l.b16 %v250
    %v287 = vunpack.c.l.b16 %v251
    %v288 = vpack.c.b16 %v285, %v284
    %v289 = vpack.c.b16 %v287, %v286
    %vm290 = vcmask 523264
    %v292 = vsel %vm290, %v288, 0
    %v295 = vsel %vm290, %v289, 0
    %297 = vmatprep.subr.bf16.mxu0 0
    %298 = vmatpush1.bf16.msra.mxu0 0
    %299 = vmatprep.subr.bf16.mxu0 0
    %300 = vmatpush1.bf16.msra.mxu0 0
    %301 = vmatprep.subr.bf16.mxu0 0
    %302 = vmatpush1.bf16.msra.mxu0 0
    %303 = vmatprep.subr.bf16.mxu0 0
    %304 = vmatpush1.bf16.msra.mxu0 0
    %305 = vmatprep.subr.bf16.mxu0 0
    %306 = vmatpush1.bf16.msra.mxu0 %v255
    %307 = vmatprep.subr.bf16.mxu0 0
    %308 = vmatpush1.bf16.msra.mxu0 %v254
    %309 = vmatprep.subr.bf16.mxu0 0
    %310 = vmatpush1.bf16.msra.mxu0 %v253
    %311 = vmatprep.subr.bf16.mxu0 0
    %312 = vmatpush1.bf16.msra.mxu0 %v252
    %313 = vmatprep.subr.bf16.mxu0 0
    %314 = vmatpush2.bf16.msra.mxu0 0
    %315 = vmatprep.subr.bf16.mxu0 0
    %316 = vmatpush2.bf16.msra.mxu0 0
    %317 = vmatprep.subr.bf16.mxu0 0
    %318 = vmatpush2.bf16.msra.mxu0 0
    %319 = vmatprep.subr.bf16.mxu0 0
    %320 = vmatpush2.bf16.msra.mxu0 0
    %321 = vmatprep.subr.bf16.mxu0 0
    %322 = vmatpush2.bf16.msra.mxu0 0
    %323 = vmatprep.subr.bf16.mxu0 0
    %324 = vmatpush2.bf16.msra.mxu0 0
    %325 = vmatprep.subr.bf16.mxu0 0
    %326 = vmatpush2.bf16.msra.mxu0 0
    %327 = vmatprep.subr.bf16.mxu0 0
    %328 = vmatpush2.bf16.msra.mxu0 0
    %329 = vmatprep.mubr.bf16.mxu0 0
    %330 = vmatmul.mubr.bf16.gmra.mxu0 %v292
    %v331 = vpop.f32.mrf.mxu0
    %v332 = vadd.f32 %v263, %v331
    %v333 = vpop.f32.mrf.mxu0
    %v334 = vpop.f32.mrf.mxu0
    %v335 = vadd.f32 %v268, %v334
    %v336 = vpop.f32.mrf.mxu0
    %337 = vmatprep.mubr.bf16.mxu0 0
    %338 = vmatmul.mubr.bf16.gmra.mxu0 %v295
    %v339 = vpop.f32.mrf.mxu0
    %v340 = vadd.f32 %v273, %v339
    %v341 = vpop.f32.mrf.mxu0
    %v342 = vpop.f32.mrf.mxu0
    %v343 = vadd.f32 %v278, %v342
    %v344 = vpop.f32.mrf.mxu0
    %345 = vdwg.mxu0
    %v346 = vxor.u32 %v332, 2147483648
    %v347 = vxor.u32 %v335, 2147483648
    %v348 = vxor.u32 %v340, 2147483648
    %v349 = vxor.u32 %v343, 2147483648
    %v350 = vmul.f32 %v346, 1.442695
    %v351 = vpow.pop %v350
    %v352 = vmul.f32 %v347, 1.442695
    %v353 = vpow.pop %v352
    %v354 = vmul.f32 %v348, 1.442695
    %v355 = vpow.pop %v354
    %v356 = vmul.f32 %v349, 1.442695
    %v357 = vpow.pop %v356
    %v358 = vadd.f32 %v351, 1.0
    %v359 = vadd.f32 %v353, 1.0
    %v360 = vadd.f32 %v355, 1.0
    %v361 = vadd.f32 %v357, 1.0
    %v362 = vrcp.pop %v358
    %v363 = vmul.f32 1.0, %v362
    %v364 = vrcp.pop %v359
    %v365 = vmul.f32 1.0, %v364
    %v366 = vrcp.pop %v360
    %v367 = vmul.f32 1.0, %v366
    %v368 = vrcp.pop %v361
    %v369 = vmul.f32 1.0, %v368
    %v370 = vld [vmem:[%s5] sm:$0xff]
    %v371 = vld [vmem:[%s5 + $0x8] sm:$0xff]
    %v372 = vld [vmem:[%s5 + $0x10] sm:$0xff]
    %v373 = vld [vmem:[%s5 + $0x18] sm:$0xff]
    %375 = vset.pattern.permute.xlu0 0
    %376 = vperm.xlu0 %375, %v370
    %v377 = vpop.permute.xlu0 %376
    %380 = vset.pattern.permute.xlu0 0
    %381 = vperm.xlu0 %380, %v371
    %v382 = vpop.permute.xlu0 %381
    %385 = vset.pattern.permute.xlu0 0
    %386 = vperm.xlu0 %385, %v372
    %v387 = vpop.permute.xlu0 %386
    %390 = vset.pattern.permute.xlu0 0
    %391 = vperm.xlu0 %390, %v373
    %v392 = vpop.permute.xlu0 %391
    %v394 = vmul.f32 %v377, %v363
    %v395 = vmul.f32 %v382, %v365
    %v396 = vmul.f32 %v387, %v367
    %v397 = vmul.f32 %v392, %v369
    %v398 = vadd.f32 %v394, %v395
    %v399 = vadd.f32 %v398, %v396
    %v400 = vadd.f32 %v399, %v397
    %v401 = vrot.slane %v400, 4
    %v402 = vadd.f32 %v400, %v401
    %v403 = vrot.slane %v402, 2
    %v404 = vadd.f32 %v402, %v403
    %v405 = vrot.slane %v404, 1
    %v406 = vadd.f32 %v404, %v405
    %v407 = vld [vmem:[#allocation2] sm:$0x1]
    %409 = vset.pattern.permute.xlu0 0
    %410 = vperm.xlu0 %409, %v407
    %v411 = vpop.permute.xlu0 %410
    %v413 = vlaneseq
    %v414 = vshrl.u32 %v413, 7
    %v415 = vsub.s32 0, %v414
    %v416 = vrot.slane %v411, %v415
    %v417 = vadd.f32 %v406, %v416
    %418 = vst [vmem:[#allocation3] sm:$0x1] %v417
    // Predicated region
    $region30: #{tpu_custom_call.1} parent=1 // pred_check
      _
    $region31: #{tpu_custom_call.1} parent=1 // pred_check_branch
      %420 = sbr.rel (0) target = $region33
    $region32: #{tpu_custom_call.1} parent=1 // pred_region
      %s422 = ssub.s32 16, 16
      %423 = vsyncadd [#allocation4], %s422
      %s425 = sshll.u32 [#allocation3], 4
      %s426 = int_to_ptr.vmem [resolvable:$true] %s425
      %428 = dma.vmem_to_hbm [thread:$0]  %s426, 16, %s7, [#allocation4]
    $region33: #{tpu_custom_call.1} parent=1 // pred_fallthru
      _
    // Predicated region
    $region34: #{tpu_custom_call.1} parent=1 // pred_check
      _
    $region35: #{tpu_custom_call.1} parent=1 // pred_check_branch
      %430 = sbr.rel (0) target = $region37
    $region36: #{tpu_custom_call.1} parent=1 // pred_region
      %431 = dma.done [#allocation4], 16
    $region37: #{tpu_custom_call.1} parent=1 // pred_fallthru
      _
    %432 = vsyncpa [#allocation4], 1

</llo_original>
